<compile_context>
chip_gen: v7x
topology: tpu7x:2x2x1
jax: 0.10.0
libtpu: 0.0.40
codegen_flags: <defaults>
</compile_context>

<pallas_src>
import jax
import jax.numpy as jnp
from jax.experimental import pallas as pl
from jax.experimental.pallas import tpu as pltpu


# --------------------------- kernels ---------------------------

def _status_kernel_rows(xs_ref, w_ref, add_ref, out_ref):
    # Row-major path (M on sublanes).
    # xs_ref: (Mt, 2D)   w_ref: (2D, S)   add_ref: (Mt, S)   out_ref: (Mt, S)
    acc = jnp.dot(xs_ref[...], w_ref[...], preferred_element_type=jnp.float32)
    out_ref[...] = (acc + add_ref[...]).astype(out_ref.dtype)


def _status_kernel_lanes(xs_t_ref, w_t_ref, add_t_ref, out_ref):
    # Lane-dense path (M on lanes -> unmasked full-lane output stores).
    # xs_t_ref: (2D, Mt)  w_t_ref: (S, 2D)  add_t_ref: (S, Mt)  out_ref: (S, Mt)
    acc = jnp.dot(w_t_ref[...], xs_t_ref[...], preferred_element_type=jnp.float32)
    out_ref[...] = (acc + add_t_ref[...]).astype(out_ref.dtype)


# --------------------------- tiling helpers ---------------------------

def _rows_per_tile(B, P, cap):
    """Rows per grid step for the row-major path. Prefer a single full-array
    block when it fits the VMEM-driven cap; otherwise the largest whole-batch
    group with 8-aligned rows."""
    M = B * P
    if M <= cap:
        return M
    legal = [nb for nb in range(1, B + 1)
             if B % nb == 0 and ((nb * P) % 8 == 0 or nb == B)]
    fitting = [nb for nb in legal if nb * P <= cap]
    nb = max(fitting) if fitting else min(legal)
    return nb * P


def _cols_per_tile(M, cap):
    """Columns (lane axis) per grid step for the lane-dense path: the largest
    multiple-of-128 divisor of M that fits the cap (M itself when it fits)."""
    if M <= cap:
        return M
    best, d = 128, 128
    while d <= cap:
        if M % d == 0:
            best = d
        d += 128
    return best


# --------------------------- wrapper ---------------------------

def status_classifier(growth, season, level, w_lr, b_lr, w2, b2,
                      *, max_tile_rows=2048):
    """growth/season: (B, P, D); level: (B, 1, V);
       w_lr: (P, 1); b_lr: (P,); w2: (S, 2D+V); b2: (S,).  Returns (B, P, S)."""
    B, P, D = growth.shape
    S = w2.shape[0]
    M = B * P
    K = 2 * D
    f32 = jnp.float32
    dt = growth.dtype

    # ---- one-time preprocessing (tiny; fuses into the surrounding XLA graph) ----
    # Single fused growth|season operand: (M, 2D).
    xs = jnp.concatenate([growth.reshape(M, D), season.reshape(M, D)],
                         axis=-1).astype(dt)

    # Fold the level branch + all biases into one additive (M, S) term:
    #   add[b,p,s] = w_lr[p]*(level[b] @ w_l)[s] + b_lr[p]*sum_v w_l[v,s] + b2[s]
    w_l = jnp.transpose(w2[:, K:]).astype(f32)                         # (V, S)
    lvl_proj = level[:, 0, :].astype(f32) @ w_l                        # (B, S)
    add = (w_lr.astype(f32).reshape(P, 1)[None, :, :] * lvl_proj[:, None, :]
           + b_lr.astype(f32)[None, :, None] * jnp.sum(w_l, axis=0)[None, None, :]
           + b2.astype(f32)[None, None, :]).reshape(M, S)              # (M, S)

    compiler_params = pltpu.CompilerParams(dimension_semantics=("parallel",))

    if M % 128 == 0:
        # ---- lane-dense (transposed) layout: M on the lane axis ----
        w_t = w2[:, :K].astype(dt)                                     # (S, 2D)
        xs_t = jnp.transpose(xs)                                       # (2D, M)
        add_t = jnp.transpose(add)                                     # (S, M)
        Mt = _cols_per_tile(M, max_tile_rows)
        grid = (M // Mt,)
        out_t = pl.pallas_call(
            _status_kernel_lanes,
            out_shape=jax.ShapeDtypeStruct((S, M), dt),
            grid_spec=pltpu.PrefetchScalarGridSpec(
                num_scalar_prefetch=0,
                grid=grid,
                in_specs=[
                    pl.BlockSpec((K, Mt), lambda i: (0, i)),   # fused growth|season
                    pl.BlockSpec((S, K), lambda i: (0, 0)),    # weight (constant, tiny)
                    pl.BlockSpec((S, Mt), lambda i: (0, i)),   # folded additive term
                ],
                out_specs=pl.BlockSpec((S, Mt), lambda i: (0, i)),
            ),
            compiler_params=compiler_params,
        )(xs_t, w_t, add_t)
        return jnp.transpose(out_t).reshape(B, P, S)

    # ---- row-major fallback (small / unaligned M) ----
    w_gs = jnp.transpose(w2[:, :K]).astype(dt)                         # (2D, S)
    Mt = _rows_per_tile(B, P, max_tile_rows)
    grid = (M // Mt,)
    out_flat = pl.pallas_call(
        _status_kernel_rows,
        out_shape=jax.ShapeDtypeStruct((M, S), dt),
        grid_spec=pltpu.PrefetchScalarGridSpec(
            num_scalar_prefetch=0,
            grid=grid,
            in_specs=[
                pl.BlockSpec((Mt, K), lambda i: (i, 0)),       # fused growth|season
                pl.BlockSpec((K, S), lambda i: (0, 0)),        # weight (constant, tiny)
                pl.BlockSpec((Mt, S), lambda i: (i, 0)),       # folded additive term
            ],
            out_specs=pl.BlockSpec((Mt, S), lambda i: (i, 0)),
        ),
        compiler_params=compiler_params,
    )(xs, w_gs, add)
    return out_flat.reshape(B, P, S)


# --------------------------- pure-JAX reference ---------------------------

def status_classifier_ref(growth, season, level, w_lr, b_lr, w2, b2):
    """Pure-JAX reference mirroring the PyTorch forward exactly."""
    l = jnp.transpose(level, (0, 2, 1)) @ jnp.transpose(w_lr) + b_lr  # (B, V, P)
    l = jnp.transpose(l, (0, 2, 1))                                   # (B, P, V)
    cat = jnp.concatenate([growth, season, l], axis=2)                # (B, P, 2D+V)
    return cat @ jnp.transpose(w2) + b2                               # (B, P, S)


# --------------------------- test ---------------------------

if __name__ == "__main__":
    def run_case(B, P, D, V, S, **kw):
        key = jax.random.PRNGKey(0)
        k = jax.random.split(key, 7)
        growth = jax.random.normal(k[0], (B, P, D), jnp.float32)
        season = jax.random.normal(k[1], (B, P, D), jnp.float32)
        level = jax.random.normal(k[2], (B, 1, V), jnp.float32)
        # Parameter shapes from __init__: Linear(1, P), Linear(2D+V, S)
        w_lr = 0.1 * jax.random.normal(k[3], (P, 1), jnp.float32)
        b_lr = 0.1 * jax.random.normal(k[4], (P,), jnp.float32)
        w2 = 0.1 * jax.random.normal(k[5], (S, 2 * D + V), jnp.float32)
        b2 = 0.1 * jax.random.normal(k[6], (S,), jnp.float32)

        out = jax.block_until_ready(
            status_classifier(growth, season, level, w_lr, b_lr, w2, b2, **kw))
        ref = status_classifier_ref(growth, season, level, w_lr, b_lr, w2, b2)
        assert out.shape == (B, P, S)
        assert jnp.allclose(out, ref, atol=1e-3, rtol=1e-3), (
            f"mismatch vs reference (B={B}, P={P}, D={D}, kw={kw})")

    # 1) toy module sizes -> row-major kernel, single grid step
    run_case(B=2, P=8, D=32, V=4, S=6)
    # 2) M multiple of 128 -> lane-dense kernel, single grid step
    run_case(B=2, P=128, D=32, V=4, S=6)
    # 3) same shapes with a forced smaller tile -> lane-dense, 2 parallel steps
    run_case(B=2, P=128, D=32, V=4, S=6, max_tile_rows=128)

    print("KERNEL_OK")
</pallas_src>

<mosaic_0001>
module attributes {stable_mosaic.version = 11 : i64} {
  func.func @_status_kernel_rows(%arg0: i32, %arg1: memref<16x64xf32, #tpu.memory_space<vmem>>, %arg2: memref<64x6xf32, #tpu.memory_space<vmem>>, %arg3: memref<16x6xf32, #tpu.memory_space<vmem>>, %arg4: memref<16x6xf32, #tpu.memory_space<vmem>>) attributes {dimension_semantics = [#tpu.dimension_semantics<parallel>], iteration_bounds = array<i64: 1>, scalar_prefetch = 0 : i64, scratch_operands = 0 : i64, tpu.core_type = #tpu.core_type<tc>, window_params = [{transform_indices = @transform_0, window_bounds = array<i64: 16, 64>}, {pipeline_mode = #tpu.pipeline_mode<synchronous>, transform_indices = @transform_1, window_bounds = array<i64: 64, 6>}, {transform_indices = @transform_2, window_bounds = array<i64: 16, 6>}, {transform_indices = @transform_3, window_bounds = array<i64: 16, 6>}]} {
    %c0 = arith.constant 0 : index
    %c0_0 = arith.constant 0 : index
    %0 = vector.load %arg1[%c0, %c0_0] : memref<16x64xf32, #tpu.memory_space<vmem>>, vector<16x64xf32>
    %c0_1 = arith.constant 0 : index
    %c0_2 = arith.constant 0 : index
    %1 = vector.load %arg2[%c0_1, %c0_2] : memref<64x6xf32, #tpu.memory_space<vmem>>, vector<64x6xf32>
    %cst = arith.constant dense<0.000000e+00> : vector<16x6xf32>
    %2 = tpu.matmul %0, %1, %cst {dimension_numbers = #tpu.dot_dimension_numbers<[1], [0], [0], [1], [0, 0, 1, 1], [], []>} : vector<16x64xf32>, vector<64x6xf32>, vector<16x6xf32> -> vector<16x6xf32>
    %c0_3 = arith.constant 0 : index
    %c0_4 = arith.constant 0 : index
    %3 = vector.load %arg3[%c0_3, %c0_4] : memref<16x6xf32, #tpu.memory_space<vmem>>, vector<16x6xf32>
    %4 = arith.addf %2, %3 : vector<16x6xf32>
    %c0_5 = arith.constant 0 : index
    %c0_6 = arith.constant 0 : index
    %5 = vector.load %arg4[%c0_5, %c0_6] : memref<16x6xf32, #tpu.memory_space<vmem>>, vector<16x6xf32>
    tpu.vector_store %arg4[%c0_5, %c0_6], %4 {strides = array<i32>} : memref<16x6xf32, #tpu.memory_space<vmem>>, vector<16x6xf32>,
    return
  }
  func.func @transform_0(%arg0: i32) -> (i32, i32) {
    %c0_i32 = arith.constant 0 : i32
    %c0_i32_0 = arith.constant 0 : i32
    return %arg0, %c0_i32 : i32, i32
  }
  func.func @transform_1(%arg0: i32) -> (i32, i32) {
    %c0_i32 = arith.constant 0 : i32
    %c0_i32_0 = arith.constant 0 : i32
    %c0_i32_1 = arith.constant 0 : i32
    return %c0_i32, %c0_i32_0 : i32, i32
  }
  func.func @transform_2(%arg0: i32) -> (i32, i32) {
    %c0_i32 = arith.constant 0 : i32
    %c0_i32_0 = arith.constant 0 : i32
    return %arg0, %c0_i32 : i32, i32
  }
  func.func @transform_3(%arg0: i32) -> (i32, i32) {
    %c0_i32 = arith.constant 0 : i32
    %c0_i32_0 = arith.constant 0 : i32
    return %arg0, %c0_i32 : i32, i32
  }
}

</mosaic_0001>

<llo_original>
// kernel: tpu_custom_call.1
$region0: #{tpu_custom_call.1}
  #allocation0 [shape = 'u32[]', space=smem, size = 0x4, offset = 0x4, fixed_abs, tag = 'smem constant byte address 0x4 - core index']
  #allocation1 [shape = 'u32[144,128]{1,0:T(1,128)}', space=vmem, size = 0x12000, scoped, tag = 'internal scratch']
  %s0 = inlined_call_operand.vmem [shape: f32[16,64], index: 0, kind: input, shape index: {}]
  %s1 = inlined_call_operand.vmem [shape: f32[64,6], index: 1, kind: input, shape index: {}]
  %s2 = inlined_call_operand.vmem [shape: f32[16,6], index: 2, kind: input, shape index: {}]
  %s3 = inlined_call_operand.vmem [shape: f32[16,6], index: 3, kind: output, shape index: {}]
  %s4 = sld [smem:[#allocation0]]
  $region22: #{tpu_custom_call.1} parent=0
    _
  %s6 = ssub.s32 1, %s4
  %s7 = scalar_select 0, %s6, %s4
  // Predicated region
  $region2: #{tpu_custom_call.1} parent=0 // pred_check
    _
  $region3: #{tpu_custom_call.1} parent=0 // pred_check_branch
    %9 = sbr.rel (0) target = $region5
  $region4: #{tpu_custom_call.1} parent=0 // pred_region
    _
  $region5: #{tpu_custom_call.1} parent=0 // pred_fallthru
    _
  // Predicated region
  $region6: #{tpu_custom_call.1} parent=0 // pred_check
    _
  $region7: #{tpu_custom_call.1} parent=0 // pred_check_branch
    %11 = sbr.rel (0) target = $region9
  $region8: #{tpu_custom_call.1} parent=0 // pred_region
    _
  $region9: #{tpu_custom_call.1} parent=0 // pred_fallthru
    _
  // Predicated region
  $region10: #{tpu_custom_call.1} parent=0 // pred_check
    _
  $region11: #{tpu_custom_call.1} parent=0 // pred_check_branch
    %13 = sbr.rel (0) target = $region13
  $region12: #{tpu_custom_call.1} parent=0 // pred_region
    _
  $region13: #{tpu_custom_call.1} parent=0 // pred_fallthru
    _
  %v14 = vld [vmem:[%s0] sm:$0xff]
  %v15 = vld [vmem:[%s0 + $0x8] sm:$0xff]
  %v16 = vld [vmem:[%s1] sm:$0xff]
  %v17 = vld [vmem:[%s1 + $0x8] sm:$0xff]
  %v18 = vld [vmem:[%s1 + $0x10] sm:$0xff]
  %v19 = vld [vmem:[%s1 + $0x18] sm:$0xff]
  %v20 = vld [vmem:[%s1 + $0x20] sm:$0xff]
  %v21 = vld [vmem:[%s1 + $0x28] sm:$0xff]
  %v22 = vld [vmem:[%s1 + $0x30] sm:$0xff]
  %v23 = vld [vmem:[%s1 + $0x38] sm:$0xff]
  %v24 = vld [vmem:[%s2] sm:$0xff]
  %v25 = vld [vmem:[%s2 + $0x8] sm:$0xff]
  %vm26 = vcmask 523264
  %v28 = vsel %vm26, %v14, 0
  %v31 = vsel %vm26, %v15, 0
  %33 = vmatprep.subr.mxu0 0.0
  %34 = vmatpush1.msra.mxu0 %v16
  %35 = vmatprep.subr.mxu0 0.0
  %36 = vmatpush1.msra.mxu0 %v17
  %37 = vmatprep.subr.mxu0 0.0
  %38 = vmatpush1.msra.mxu0 %v18
  %39 = vmatprep.subr.mxu0 0.0
  %40 = vmatpush1.msra.mxu0 %v19
  %41 = vmatprep.subr.mxu0 0.0
  %42 = vmatpush1.msra.mxu0 %v20
  %43 = vmatprep.subr.mxu0 0.0
  %44 = vmatpush1.msra.mxu0 %v21
  %45 = vmatprep.subr.mxu0 0.0
  %46 = vmatpush1.msra.mxu0 %v22
  %47 = vmatprep.subr.mxu0 0.0
  %48 = vmatpush1.msra.mxu0 %v23
  %49 = vmatprep.subr.mxu0 0.0
  %50 = vmatpush1.msra.mxu0 0.0
  %51 = vmatprep.subr.mxu0 0.0
  %52 = vmatpush1.msra.mxu0 0.0
  %53 = vmatprep.subr.mxu0 0.0
  %54 = vmatpush1.msra.mxu0 0.0
  %55 = vmatprep.subr.mxu0 0.0
  %56 = vmatpush1.msra.mxu0 0.0
  %57 = vmatprep.subr.mxu0 0.0
  %58 = vmatpush1.msra.mxu0 0.0
  %59 = vmatprep.subr.mxu0 0.0
  %60 = vmatpush1.msra.mxu0 0.0
  %61 = vmatprep.subr.mxu0 0.0
  %62 = vmatpush1.msra.mxu0 0.0
  %63 = vmatprep.subr.mxu0 0.0
  %64 = vmatpush1.msra.mxu0 0.0
  %65 = vmatprep.subr.mxu0 0.0
  %66 = vmatpush1.msra.mxu0 0.0
  %67 = vmatprep.subr.mxu0 0.0
  %68 = vmatpush1.msra.mxu0 0.0
  %69 = vmatprep.subr.mxu0 0.0
  %70 = vmatpush1.msra.mxu0 0.0
  %71 = vmatprep.subr.mxu0 0.0
  %72 = vmatpush1.msra.mxu0 0.0
  %73 = vmatprep.subr.mxu0 0.0
  %74 = vmatpush1.msra.mxu0 0.0
  %75 = vmatprep.subr.mxu0 0.0
  %76 = vmatpush1.msra.mxu0 0.0
  %77 = vmatprep.subr.mxu0 0.0
  %78 = vmatpush1.msra.mxu0 0.0
  %79 = vmatprep.subr.mxu0 0.0
  %80 = vmatpush1.msra.mxu0 0.0
  %81 = vmatprep.subr.mxu0 0.0
  %82 = vmatpush1.msra.mxu0 0.0
  %83 = vmatprep.subr.mxu0 0.0
  %84 = vmatpush1.msra.mxu0 0.0
  %85 = vmatprep.subr.mxu0 0.0
  %86 = vmatpush1.msra.mxu0 0.0
  %87 = vmatprep.subr.mxu0 0.0
  %88 = vmatpush1.msra.mxu0 0.0
  %89 = vmatprep.subr.mxu0 0.0
  %90 = vmatpush1.msra.mxu0 0.0
  %91 = vmatprep.subr.mxu0 0.0
  %92 = vmatpush1.msra.mxu0 0.0
  %93 = vmatprep.subr.mxu0 0.0
  %94 = vmatpush1.msra.mxu0 0.0
  %95 = vmatprep.subr.mxu0 0.0
  %96 = vmatpush1.msra.mxu0 0.0
  %97 = vmatprep.mubr.f32.mxu0 0.0
  %98 = vmatmul.mubr.f32.gmra.mrb[0].mxu0 %v28
  %v99 = vpop.f32.mrb[0].mxu0
  %v100 = vadd.f32 %v24, %v99
  %v101 = vpop.f32.mrb[0].mxu0
  %102 = vmatprep.mubr.f32.mxu0 0.0
  %103 = vmatmul.mubr.f32.gmra.mrb[0].mxu0 %v31
  %v104 = vpop.f32.mrb[0].mxu0
  %v105 = vadd.f32 %v25, %v104
  %v106 = vpop.f32.mrb[0].mxu0
  %107 = vdwg.mxu0
  %vm108 = vcmask 48128
  %109 = vst.msk [vmem:[%s3] sm:$0xff] %vm108, %v100
  %110 = vst.msk [vmem:[%s3 + $0x8] sm:$0xff] %vm108, %v105
  // Predicated region
  $region14: #{tpu_custom_call.1} parent=0 // pred_check
    _
  $region15: #{tpu_custom_call.1} parent=0 // pred_check_branch
    %112 = sbr.rel (0) target = $region17
  $region16: #{tpu_custom_call.1} parent=0 // pred_region
    _
  $region17: #{tpu_custom_call.1} parent=0 // pred_fallthru
    _
  // Predicated region
  $region18: #{tpu_custom_call.1} parent=0 // pred_check
    _
  $region19: #{tpu_custom_call.1} parent=0 // pred_check_branch
    %114 = sbr.rel (0) target = $region21
  $region20: #{tpu_custom_call.1} parent=0 // pred_region
    _
  $region21: #{tpu_custom_call.1} parent=0 // pred_fallthru
    _

</llo_original>
